<compile_context>
chip_gen: v7x
topology: tpu7x:2x2x1
jax: 0.10.0
libtpu: 0.0.40
codegen_flags: <defaults>
</compile_context>

<pallas_src>
import functools

import jax
import jax.numpy as jnp
from jax.experimental import pallas as pl
from jax.experimental.pallas import tpu as pltpu


IN_DIM = 36
HID_DIM = 500
OUT_DIM = 3

HID_PAD = 512   # hidden padded to a lane multiple -> dense vregs on the MXU
OUT_PAD = 128   # matmul-2 MXU output width (lane multiple); only 3 cols real

TB_MAX = 1024       # max batch tile (fits comfortably in scoped VMEM on v5e/v6e/v7x)
SMALL_BATCH = 256   # below this, plain jnp beats kernel launch overhead


def _round_up(x, m):
    return (x + m - 1) // m * m


def _mlp_kernel(x_ref, w1_ref, b1_ref, w2_ref, b2_ref, o_ref):
    # Layer 1: bf16 MXU operands, f32 accumulation; bias + ReLU in f32 (VPU).
    x = x_ref[...].astype(jnp.bfloat16)                               # (TB, 36)
    h = jnp.dot(x, w1_ref[...],
                preferred_element_type=jnp.float32)                   # (TB, 512) f32
    h = jnp.maximum(h + b1_ref[...], 0.0)                             # f32 bias + ReLU
    # Layer 2: bf16 MXU operands, f32 accumulation (128-wide padded w2).
    o = jnp.dot(h.astype(jnp.bfloat16), w2_ref[...],
                preferred_element_type=jnp.float32)                   # (TB, 128) f32
    # Only the first OUT_DIM lanes are real; store the narrow (TB, 3) block so
    # HBM writeback is 12 B/row instead of 512 B/row.
    o_ref[...] = (o[:, :OUT_DIM] + b2_ref[...]).astype(o_ref.dtype)


def _pad_params(w1, b1, w2, b2):
    """Zero-pad params to MXU-friendly shapes; weights cast to bf16.

    Padded hidden columns of w1/b1 are zero (-> ReLU(0) = 0) and padded
    rows/cols of w2 are zero, so padding cannot perturb the real outputs.
    """
    w1p = jnp.zeros((IN_DIM, HID_PAD), jnp.bfloat16).at[:, :HID_DIM].set(
        w1.astype(jnp.bfloat16))
    b1p = jnp.zeros((1, HID_PAD), jnp.float32).at[:, :HID_DIM].set(
        b1.reshape(1, HID_DIM).astype(jnp.float32))
    w2p = jnp.zeros((HID_PAD, OUT_PAD), jnp.bfloat16).at[:HID_DIM, :OUT_DIM].set(
        w2.astype(jnp.bfloat16))
    b2p = b2.reshape(1, OUT_DIM).astype(jnp.float32)
    return w1p, b1p, w2p, b2p


def network_forward_pallas(x, w1, b1, w2, b2):
    """x: (B, 36) f32 -> (B, 3) f32 via the Pallas kernel."""
    B = x.shape[0]
    w1p, b1p, w2p, b2p = _pad_params(w1, b1, w2, b2)

    # Batch tile: multiple of 8 (sublane), capped at TB_MAX; pad B to a tile
    # multiple so the last tile is never ragged (VMEM OOB is unchecked).
    tb = min(TB_MAX, _round_up(B, 8))
    b_pad = _round_up(B, tb)
    if b_pad != B:
        x = jnp.pad(x, ((0, b_pad - B), (0, 0)))

    grid = (b_pad // tb,)

    flops = 2 * b_pad * (IN_DIM * HID_PAD + HID_PAD * OUT_PAD)
    bytes_accessed = (b_pad * IN_DIM * 4 + b_pad * OUT_DIM * 4
                      + IN_DIM * HID_PAD * 2 + HID_PAD * OUT_PAD * 2
                      + (HID_PAD + OUT_DIM) * 4)

    out = pl.pallas_call(
        _mlp_kernel,
        out_shape=jax.ShapeDtypeStruct((b_pad, OUT_DIM), jnp.float32),
        grid=grid,
        in_specs=[
            pl.BlockSpec((tb, IN_DIM), lambda i: (i, 0)),        # x: streamed per tile
            pl.BlockSpec((IN_DIM, HID_PAD), lambda i: (0, 0)),   # w1: VMEM-resident
            pl.BlockSpec((1, HID_PAD), lambda i: (0, 0)),        # b1: VMEM-resident
            pl.BlockSpec((HID_PAD, OUT_PAD), lambda i: (0, 0)),  # w2: VMEM-resident
            pl.BlockSpec((1, OUT_DIM), lambda i: (0, 0)),        # b2: VMEM-resident
        ],
        out_specs=pl.BlockSpec((tb, OUT_DIM), lambda i: (i, 0)),
        compiler_params=pltpu.CompilerParams(
            dimension_semantics=("parallel",)),
        cost_estimate=pl.CostEstimate(
            flops=flops, transcendentals=0, bytes_accessed=bytes_accessed),
    )(x, w1p, b1p, w2p, b2p)

    if b_pad != B:
        out = out[:B]
    return out


def network_forward_reference(x, w1, b1, w2, b2):
    """Pure-JAX forward (f32), matching PyTorch semantics exactly."""
    h = jnp.maximum(x @ w1 + b1.reshape(1, HID_DIM), 0.0)
    return h @ w2 + b2.reshape(1, OUT_DIM)


@functools.partial(jax.jit, static_argnames=())
def network_forward(x, w1, b1, w2, b2):
    """Dispatcher: tiny batches skip the kernel (pure launch overhead)."""
    if x.shape[0] < SMALL_BATCH:
        return network_forward_reference(x, w1, b1, w2, b2)
    return network_forward_pallas(x, w1, b1, w2, b2)


def init_params(key):
    """Deterministic init mimicking PyTorch nn.Linear default (uniform +-1/sqrt(fan_in)).

    Weights are stored pre-transposed as (in, out) so the kernel computes
    x @ W + b directly (same math as PyTorch's y = x @ W.T + b).
    """
    k1, k2, k3, k4 = jax.random.split(key, 4)
    bound1 = 1.0 / (IN_DIM ** 0.5)
    bound2 = 1.0 / (HID_DIM ** 0.5)
    w1 = jax.random.uniform(k1, (IN_DIM, HID_DIM), jnp.float32, -bound1, bound1)
    b1 = jax.random.uniform(k2, (HID_DIM,), jnp.float32, -bound1, bound1)
    w2 = jax.random.uniform(k3, (HID_DIM, OUT_DIM), jnp.float32, -bound2, bound2)
    b2 = jax.random.uniform(k4, (OUT_DIM,), jnp.float32, -bound2, bound2)
    return w1, b1, w2, b2


def _bf16_matched_reference(x, w1, b1, w2, b2):
    """Reference that mimics the kernel's bf16-operand / f32-accumulate math."""
    h = jnp.maximum(
        jnp.dot(x.astype(jnp.bfloat16), w1.astype(jnp.bfloat16),
                preferred_element_type=jnp.float32) + b1.reshape(1, HID_DIM),
        0.0)
    return jnp.dot(h.astype(jnp.bfloat16), w2.astype(jnp.bfloat16),
                   preferred_element_type=jnp.float32) + b2.reshape(1, OUT_DIM)


if __name__ == "__main__":
    key = jax.random.PRNGKey(0)
    kx, kx2, kp = jax.random.split(key, 3)

    w1, b1, w2, b2 = init_params(kp)

    # Smoke test 1: small aligned batch (exercises the Pallas path directly).
    B = 8
    x = jax.random.normal(kx, (B, IN_DIM), jnp.float32)
    out = jax.block_until_ready(network_forward_pallas(x, w1, b1, w2, b2))
    assert out.shape == (B, OUT_DIM)
    assert jnp.allclose(out, _bf16_matched_reference(x, w1, b1, w2, b2),
                        atol=1e-3, rtol=1e-3)
    assert jnp.allclose(out, network_forward_reference(x, w1, b1, w2, b2),
                        atol=5e-2, rtol=5e-2)

    # Smoke test 2: ragged batch (exercises row padding in the wrapper).
    B2 = 37
    x2 = jax.random.normal(kx2, (B2, IN_DIM), jnp.float32)
    out2 = jax.block_until_ready(network_forward_pallas(x2, w1, b1, w2, b2))
    assert out2.shape == (B2, OUT_DIM)
    assert jnp.allclose(out2, network_forward_reference(x2, w1, b1, w2, b2),
                        atol=5e-2, rtol=5e-2)

    print("KERNEL_OK")
</pallas_src>

<mosaic_0001>
module attributes {stable_mosaic.version = 11 : i64} {
  func.func @_mlp_kernel(%arg0: i32, %arg1: memref<8x36xf32, #tpu.memory_space<vmem>>, %arg2: memref<36x512xbf16, #tpu.memory_space<vmem>>, %arg3: memref<1x512xf32, #tpu.memory_space<vmem>>, %arg4: memref<512x128xbf16, #tpu.memory_space<vmem>>, %arg5: memref<1x3xf32, #tpu.memory_space<vmem>>, %arg6: memref<8x3xf32, #tpu.memory_space<vmem>>) attributes {dimension_semantics = [#tpu.dimension_semantics<parallel>], iteration_bounds = array<i64: 1>, scalar_prefetch = 0 : i64, scratch_operands = 0 : i64, tpu.core_type = #tpu.core_type<tc>, window_params = [{transform_indices = @transform_0, window_bounds = array<i64: 8, 36>}, {pipeline_mode = #tpu.pipeline_mode<synchronous>, transform_indices = @transform_1, window_bounds = array<i64: 36, 512>}, {pipeline_mode = #tpu.pipeline_mode<synchronous>, transform_indices = @transform_2, window_bounds = array<i64: 1, 512>}, {pipeline_mode = #tpu.pipeline_mode<synchronous>, transform_indices = @transform_3, window_bounds = array<i64: 512, 128>}, {pipeline_mode = #tpu.pipeline_mode<synchronous>, transform_indices = @transform_4, window_bounds = array<i64: 1, 3>}, {transform_indices = @transform_5, window_bounds = array<i64: 8, 3>}]} {
    %c0 = arith.constant 0 : index
    %c0_0 = arith.constant 0 : index
    %0 = vector.load %arg1[%c0, %c0_0] : memref<8x36xf32, #tpu.memory_space<vmem>>, vector<8x36xf32>
    %1 = arith.truncf %0 : vector<8x36xf32> to vector<8x36xbf16>
    %c0_1 = arith.constant 0 : index
    %c0_2 = arith.constant 0 : index
    %2 = vector.load %arg2[%c0_1, %c0_2] : memref<36x512xbf16, #tpu.memory_space<vmem>>, vector<36x512xbf16>
    %cst = arith.constant dense<0.000000e+00> : vector<8x512xf32>
    %3 = tpu.matmul %1, %2, %cst {dimension_numbers = #tpu.dot_dimension_numbers<[1], [0], [0], [1], [0, 0, 1, 1], [], []>} : vector<8x36xbf16>, vector<36x512xbf16>, vector<8x512xf32> -> vector<8x512xf32>
    %c0_3 = arith.constant 0 : index
    %c0_4 = arith.constant 0 : index
    %4 = vector.load %arg3[%c0_3, %c0_4] : memref<1x512xf32, #tpu.memory_space<vmem>>, vector<1x512xf32>
    %5 = vector.broadcast %4 : vector<1x512xf32> to vector<8x512xf32>
    %6 = arith.addf %3, %5 : vector<8x512xf32>
    %cst_5 = arith.constant 0.000000e+00 : f32
    %7 = vector.broadcast %cst_5 : f32 to vector<8x512xf32>
    %8 = arith.maximumf %6, %7 : vector<8x512xf32>
    %9 = arith.truncf %8 : vector<8x512xf32> to vector<8x512xbf16>
    %c0_6 = arith.constant 0 : index
    %c0_7 = arith.constant 0 : index
    %10 = vector.load %arg4[%c0_6, %c0_7] : memref<512x128xbf16, #tpu.memory_space<vmem>>, vector<512x128xbf16>
    %cst_8 = arith.constant dense<0.000000e+00> : vector<8x128xf32>
    %11 = tpu.matmul %9, %10, %cst_8 {dimension_numbers = #tpu.dot_dimension_numbers<[1], [0], [0], [1], [0, 0, 1, 1], [], []>} : vector<8x512xbf16>, vector<512x128xbf16>, vector<8x128xf32> -> vector<8x128xf32>
    %12 = vector.extract_strided_slice %11 {offsets = [0, 0], sizes = [8, 3], strides = [1, 1]} : vector<8x128xf32> to vector<8x3xf32>
    %c0_9 = arith.constant 0 : index
    %c0_10 = arith.constant 0 : index
    %13 = vector.load %arg5[%c0_9, %c0_10] : memref<1x3xf32, #tpu.memory_space<vmem>>, vector<1x3xf32>
    %14 = vector.broadcast %13 : vector<1x3xf32> to vector<8x3xf32>
    %15 = arith.addf %12, %14 : vector<8x3xf32>
    %c0_11 = arith.constant 0 : index
    %c0_12 = arith.constant 0 : index
    %16 = vector.load %arg6[%c0_11, %c0_12] : memref<8x3xf32, #tpu.memory_space<vmem>>, vector<8x3xf32>
    tpu.vector_store %arg6[%c0_11, %c0_12], %15 {strides = array<i32>} : memref<8x3xf32, #tpu.memory_space<vmem>>, vector<8x3xf32>,
    return
  }
  func.func @transform_0(%arg0: i32) -> (i32, i32) {
    %c0_i32 = arith.constant 0 : i32
    %c0_i32_0 = arith.constant 0 : i32
    return %arg0, %c0_i32 : i32, i32
  }
  func.func @transform_1(%arg0: i32) -> (i32, i32) {
    %c0_i32 = arith.constant 0 : i32
    %c0_i32_0 = arith.constant 0 : i32
    %c0_i32_1 = arith.constant 0 : i32
    return %c0_i32, %c0_i32_0 : i32, i32
  }
  func.func @transform_2(%arg0: i32) -> (i32, i32) {
    %c0_i32 = arith.constant 0 : i32
    %c0_i32_0 = arith.constant 0 : i32
    %c0_i32_1 = arith.constant 0 : i32
    return %c0_i32, %c0_i32_0 : i32, i32
  }
  func.func @transform_3(%arg0: i32) -> (i32, i32) {
    %c0_i32 = arith.constant 0 : i32
    %c0_i32_0 = arith.constant 0 : i32
    %c0_i32_1 = arith.constant 0 : i32
    return %c0_i32, %c0_i32_0 : i32, i32
  }
  func.func @transform_4(%arg0: i32) -> (i32, i32) {
    %c0_i32 = arith.constant 0 : i32
    %c0_i32_0 = arith.constant 0 : i32
    %c0_i32_1 = arith.constant 0 : i32
    return %c0_i32, %c0_i32_0 : i32, i32
  }
  func.func @transform_5(%arg0: i32) -> (i32, i32) {
    %c0_i32 = arith.constant 0 : i32
    %c0_i32_0 = arith.constant 0 : i32
    return %arg0, %c0_i32 : i32, i32
  }
}

</mosaic_0001>

<llo_original>
// kernel: tpu_custom_call.1
$region0: #{tpu_custom_call.1}
  #allocation0 [shape = 'u32[]', space=smem, size = 0x4, offset = 0x4, fixed_abs, tag = 'smem constant byte address 0x4 - core index']
  #allocation1 [shape = 'u32[144,128]{1,0:T(1,128)}', space=vmem, size = 0x12000, scoped, tag = 'internal scratch']
  %s0 = inlined_call_operand.hbm [shape: f32[8,36], index: 0, kind: input, shape index: {}]
  %s1 = inlined_call_operand.hbm [shape: bf16[36,512], index: 1, kind: input, shape index: {}]
  %s2 = inlined_call_operand.vmem [shape: f32[1,512], index: 2, kind: input, shape index: {}]
  %s3 = inlined_call_operand.hbm [shape: bf16[512,128], index: 3, kind: input, shape index: {}]
  %s4 = inlined_call_operand.vmem [shape: f32[1,3], index: 4, kind: input, shape index: {}]
  %s5 = inlined_call_operand.vmem [shape: f32[8,3], index: 5, kind: output, shape index: {}]
  %s6 = sld [smem:[#allocation0]]
  $region42: #{tpu_custom_call.1} parent=0
    _
  %s8 = ssub.s32 1, %s6
  %s9 = scalar_select 0, %s8, %s6
  $region1: #{tpu_custom_call.1} parent=0
    #allocation2 [shape = 'u8[4096]{0}', space=vmem, size = 0x1000, scoped, tag = 'input window, operand 0, single buffered']
    #allocation3 [shape = 's32[1]{0}', space=sflag, size = 0x4, scoped, tag = 'scoped memory for tpu_custom_call.1']
    #allocation4 [shape = 'u8[40960]{0}', space=vmem, size = 0xa000, scoped, tag = 'input window, operand 1, single buffered']
    #allocation5 [shape = 's32[1]{0}', space=sflag, size = 0x4, scoped, tag = 'scoped memory for tpu_custom_call.1']
    #allocation6 [shape = 'u8[131072]{0}', space=vmem, size = 0x20000, scoped, tag = 'input window, operand 3, single buffered']
    %10 = vsyncpa [#allocation3], 0
    %11 = vsyncpa [#allocation5], 0
    // Predicated region
    $region2: #{tpu_custom_call.1} parent=1 // pred_check
      _
    $region3: #{tpu_custom_call.1} parent=1 // pred_check_branch
      %13 = sbr.rel (0) target = $region5
    $region4: #{tpu_custom_call.1} parent=1 // pred_region
      %s15 = ssub.s32 128, 128
      %16 = vsyncadd [#allocation3], %s15
      %s18 = sshll.u32 [#allocation2], 4
      %s19 = int_to_ptr.vmem [resolvable:$true] %s18
      %21 = dma.hbm_to_vmem [thread:$0]  %s0, 128, %s19, [#allocation3]
    $region5: #{tpu_custom_call.1} parent=1 // pred_fallthru
      _
    // Predicated region
    $region6: #{tpu_custom_call.1} parent=1 // pred_check
      _
    $region7: #{tpu_custom_call.1} parent=1 // pred_check_branch
      %23 = sbr.rel (0) target = $region9
    $region8: #{tpu_custom_call.1} parent=1 // pred_region
      %s25 = ssub.s32 1280, 1280
      %26 = vsyncadd [#allocation5], %s25
      %s27 = sshll.u32 [#allocation4], 4
      %s28 = int_to_ptr.vmem [resolvable:$true] %s27
      %33 = dma.hbm_to_vmem [thread:$0]  %s1, 1280, %s28, [#allocation5], 256, 256, 16
    $region9: #{tpu_custom_call.1} parent=1 // pred_fallthru
      _
    // Predicated region
    $region10: #{tpu_custom_call.1} parent=1 // pred_check
      _
    $region11: #{tpu_custom_call.1} parent=1 // pred_check_branch
      %35 = sbr.rel (0) target = $region13
    $region12: #{tpu_custom_call.1} parent=1 // pred_region
      _
    $region13: #{tpu_custom_call.1} parent=1 // pred_fallthru
      _
    // Predicated region
    $region14: #{tpu_custom_call.1} parent=1 // pred_check
      _
    $region15: #{tpu_custom_call.1} parent=1 // pred_check_branch
      %37 = sbr.rel (0) target = $region17
    $region16: #{tpu_custom_call.1} parent=1 // pred_region
      %s39 = ssub.s32 4096, 4096
      %40 = vsyncadd [#allocation5], %s39
      %s41 = sshll.u32 [#allocation6], 4
      %s42 = int_to_ptr.vmem [resolvable:$true] %s41
      %47 = dma.hbm_to_vmem [thread:$0]  %s3, 4096, %s42, [#allocation5], 64, 64, 4
    $region17: #{tpu_custom_call.1} parent=1 // pred_fallthru
      _
    // Predicated region
    $region18: #{tpu_custom_call.1} parent=1 // pred_check
      _
    $region19: #{tpu_custom_call.1} parent=1 // pred_check_branch
      %49 = sbr.rel (0) target = $region21
    $region20: #{tpu_custom_call.1} parent=1 // pred_region
      _
    $region21: #{tpu_custom_call.1} parent=1 // pred_fallthru
      _
    // Predicated region
    $region22: #{tpu_custom_call.1} parent=1 // pred_check
      _
    $region23: #{tpu_custom_call.1} parent=1 // pred_check_branch
      %51 = sbr.rel (0) target = $region25
    $region24: #{tpu_custom_call.1} parent=1 // pred_region
      %52 = dma.done [#allocation3], 128
    $region25: #{tpu_custom_call.1} parent=1 // pred_fallthru
      _
    // Predicated region
    $region26: #{tpu_custom_call.1} parent=1 // pred_check
      _
    $region27: #{tpu_custom_call.1} parent=1 // pred_check_branch
      %54 = sbr.rel (0) target = $region29
    $region28: #{tpu_custom_call.1} parent=1 // pred_region
      %55 = dma.done [#allocation5], 1280
    $region29: #{tpu_custom_call.1} parent=1 // pred_fallthru
      _
    // Predicated region
    $region30: #{tpu_custom_call.1} parent=1 // pred_check
      _
    $region31: #{tpu_custom_call.1} parent=1 // pred_check_branch
      %57 = sbr.rel (0) target = $region33
    $region32: #{tpu_custom_call.1} parent=1 // pred_region
      %58 = dma.done [#allocation5], 4096
    $region33: #{tpu_custom_call.1} parent=1 // pred_fallthru
      _
    %v60 = vld [vmem:[#allocation2] sm:$0xff]
    %v61 = vpack.c.bf16 %v60, %v60
    %v62 = vld [vmem:[#allocation4] sm:$0xff]
    %v63 = vld [vmem:[#allocation4 + $0x8] sm:$0xff]
    %v64 = vld [vmem:[#allocation4 + $0x10] sm:$0xff]
    %v65 = vld [vmem:[#allocation4 + $0x18] sm:$0xff]
    %v66 = vld [vmem:[#allocation4 + $0x20] sm:$0xff]
    %v67 = vld [vmem:[#allocation4 + $0x28] sm:$0xff]
    %v68 = vld [vmem:[#allocation4 + $0x30] sm:$0xff]
    %v69 = vld [vmem:[#allocation4 + $0x38] sm:$0xff]
    %v70 = vld [vmem:[#allocation4 + $0x40] sm:$0x33]
    %v71 = vld [vmem:[#allocation4 + $0x48] sm:$0x33]
    %v72 = vld [vmem:[%s2] sm:$0xf]
    %v74 = vlaneseq
    %v75 = vshrl.u32 %v74, 7
    %v76 = vsub.s32 0, %v75
    %v77 = vrot.slane %v72, %v76
    %v78 = vlaneseq
    %v79 = vshrl.u32 %v78, 7
    %v80 = vsub.s32 1, %v79
    %v81 = vrot.slane %v72, %v80
    %v82 = vlaneseq
    %v83 = vshrl.u32 %v82, 7
    %v84 = vsub.s32 2, %v83
    %v85 = vrot.slane %v72, %v84
    %v86 = vlaneseq
    %v87 = vshrl.u32 %v86, 7
    %v88 = vsub.s32 3, %v87
    %v89 = vrot.slane %v72, %v88
    %v104 = vunpack.c.l.b16 %v62
    %v105 = vunpack.c.h.b16 %v62
    %v106 = vunpack.c.l.b16 %v63
    %v107 = vunpack.c.h.b16 %v63
    %v108 = vunpack.c.l.b16 %v64
    %v109 = vunpack.c.h.b16 %v64
    %v110 = vunpack.c.l.b16 %v65
    %v111 = vunpack.c.h.b16 %v65
    %v112 = vunpack.c.l.b16 %v66
    %v113 = vunpack.c.h.b16 %v66
    %v114 = vunpack.c.l.b16 %v67
    %v115 = vunpack.c.h.b16 %v67
    %v116 = vunpack.c.l.b16 %v68
    %v117 = vunpack.c.h.b16 %v68
    %v118 = vunpack.c.l.b16 %v69
    %v119 = vunpack.c.h.b16 %v69
    %v120 = vunpack.c.l.b16 %v70
    %v121 = vunpack.c.h.b16 %v70
    %v122 = vunpack.c.l.b16 %v71
    %v123 = vunpack.c.h.b16 %v71
    %v124 = vpack.c.b16 %v108, %v104
    %v125 = vpack.c.b16 %v109, %v105
    %v126 = vpack.c.b16 %v110, %v106
    %v127 = vpack.c.b16 %v111, %v107
    %v128 = vpack.c.b16 %v116, %v112
    %v129 = vpack.c.b16 %v117, %v113
    %v130 = vpack.c.b16 %v118, %v114
    %v131 = vpack.c.b16 %v119, %v115
    %v132 = vpack.c.b16 %v120, %v120
    %v133 = vpack.c.b16 %v121, %v121
    %v134 = vpack.c.b16 %v122, %v122
    %v135 = vpack.c.b16 %v123, %v123
    %vm144 = vcmask 293888
    %v146 = vsel %vm144, %v61, 0
    %vm148 = vcmask 1041408
    %v150 = vsel %vm148, %v132, 0
    %v153 = vsel %vm148, %v133, 0
    %v156 = vsel %vm148, %v134, 0
    %v159 = vsel %vm148, %v135, 0
    %161 = vmatprep.subr.bf16.mxu0 %v125
    %162 = vmatpush1.bf16.msra.mxu0 %v124
    %163 = vmatprep.subr.bf16.mxu0 %v129
    %164 = vmatpush1.bf16.msra.mxu0 %v128
    %165 = vmatprep.subr.bf16.mxu0 %v153
    %166 = vmatpush1.bf16.msra.mxu0 %v150
    %167 = vmatprep.subr.bf16.mxu0 0
    %168 = vmatpush1.bf16.msra.mxu0 0
    %169 = vmatprep.subr.bf16.mxu0 0
    %170 = vmatpush1.bf16.msra.mxu0 0
    %171 = vmatprep.subr.bf16.mxu0 0
    %172 = vmatpush1.bf16.msra.mxu0 0
    %173 = vmatprep.subr.bf16.mxu0 0
    %174 = vmatpush1.bf16.msra.mxu0 0
    %175 = vmatprep.subr.bf16.mxu0 0
    %176 = vmatpush1.bf16.msra.mxu0 0
    %177 = vmatprep.subr.bf16.mxu0 0
    %178 = vmatpush1.bf16.msra.mxu0 0
    %179 = vmatprep.subr.bf16.mxu0 0
    %180 = vmatpush1.bf16.msra.mxu0 0
    %181 = vmatprep.subr.bf16.mxu0 0
    %182 = vmatpush1.bf16.msra.mxu0 0
    %183 = vmatprep.subr.bf16.mxu0 0
    %184 = vmatpush1.bf16.msra.mxu0 0
    %185 = vmatprep.subr.bf16.mxu0 0
    %186 = vmatpush1.bf16.msra.mxu0 0
    %187 = vmatprep.subr.bf16.mxu0 0
    %188 = vmatpush1.bf16.msra.mxu0 0
    %189 = vmatprep.subr.bf16.mxu0 0
    %190 = vmatpush1.bf16.msra.mxu0 0
    %191 = vmatprep.subr.bf16.mxu0 0
    %192 = vmatpush1.bf16.msra.mxu0 0
    %193 = vmatprep.mubr.bf16.mxu0 0
    %194 = vmatmul.mubr.bf16.gmra.mrb[0].mxu0 %v146
    %v195 = vpop.f32.mrb[0].mxu0
    %v196 = vadd.f32 %v77, %v195
    %v197 = vpop.f32.mrb[0].mxu0
    %v198 = vadd.f32 %v81, %v197
    %v199 = vpop.f32.mrb[0].mxu0
    %v200 = vpop.f32.mrb[0].mxu0
    %201 = vdwg.mxu0
    %202 = vmatprep.subr.bf16.mxu0 %v127
    %203 = vmatpush1.bf16.msra.mxu0 %v126
    %204 = vmatprep.subr.bf16.mxu0 %v131
    %205 = vmatpush1.bf16.msra.mxu0 %v130
    %206 = vmatprep.subr.bf16.mxu0 %v159
    %207 = vmatpush1.bf16.msra.mxu0 %v156
    %208 = vmatprep.subr.bf16.mxu0 0
    %209 = vmatpush1.bf16.msra.mxu0 0
    %210 = vmatprep.subr.bf16.mxu0 0
    %211 = vmatpush1.bf16.msra.mxu0 0
    %212 = vmatprep.subr.bf16.mxu0 0
    %213 = vmatpush1.bf16.msra.mxu0 0
    %214 = vmatprep.subr.bf16.mxu0 0
    %215 = vmatpush1.bf16.msra.mxu0 0
    %216 = vmatprep.subr.bf16.mxu0 0
    %217 = vmatpush1.bf16.msra.mxu0 0
    %218 = vmatprep.subr.bf16.mxu0 0
    %219 = vmatpush1.bf16.msra.mxu0 0
    %220 = vmatprep.subr.bf16.mxu0 0
    %221 = vmatpush1.bf16.msra.mxu0 0
    %222 = vmatprep.subr.bf16.mxu0 0
    %223 = vmatpush1.bf16.msra.mxu0 0
    %224 = vmatprep.subr.bf16.mxu0 0
    %225 = vmatpush1.bf16.msra.mxu0 0
    %226 = vmatprep.subr.bf16.mxu0 0
    %227 = vmatpush1.bf16.msra.mxu0 0
    %228 = vmatprep.subr.bf16.mxu0 0
    %229 = vmatpush1.bf16.msra.mxu0 0
    %230 = vmatprep.subr.bf16.mxu0 0
    %231 = vmatpush1.bf16.msra.mxu0 0
    %232 = vmatprep.subr.bf16.mxu0 0
    %233 = vmatpush1.bf16.msra.mxu0 0
    %234 = vmatprep.mubr.bf16.mxu0 0
    %235 = vmatmul.mubr.bf16.gmra.mrb[0].mxu0 %v146
    %v236 = vpop.f32.mrb[0].mxu0
    %v237 = vadd.f32 %v85, %v236
    %v238 = vpop.f32.mrb[0].mxu0
    %v239 = vadd.f32 %v89, %v238
    %v240 = vpop.f32.mrb[0].mxu0
    %v241 = vpop.f32.mrb[0].mxu0
    %242 = vdwg.mxu0
    %v243 = vmax.f32 %v196, 0.0
    %v244 = vmax.f32 %v198, 0.0
    %v245 = vmax.f32 %v237, 0.0
    %v246 = vmax.f32 %v239, 0.0
    %v247 = vpack.c.bf16 %v243, %v243
    %v248 = vpack.c.bf16 %v244, %v244
    %v249 = vpack.c.bf16 %v245, %v245
    %v250 = vpack.c.bf16 %v246, %v246
    %v251 = vld [vmem:[#allocation6] sm:$0xf]
    %v252 = vld [vmem:[#allocation6 + $0x4] sm:$0xf]
    %v253 = vld [vmem:[#allocation6 + $0x8] sm:$0xf]
    %v254 = vld [vmem:[#allocation6 + $0xc] sm:$0xf]
    %v255 = vld [vmem:[#allocation6 + $0x10] sm:$0xf]
    %v256 = vld [vmem:[#allocation6 + $0x14] sm:$0xf]
    %v257 = vld [vmem:[#allocation6 + $0x18] sm:$0xf]
    %v258 = vld [vmem:[#allocation6 + $0x1c] sm:$0xf]
    %v259 = vld [vmem:[#allocation6 + $0x20] sm:$0xf]
    %v260 = vld [vmem:[#allocation6 + $0x24] sm:$0xf]
    %v261 = vld [vmem:[#allocation6 + $0x28] sm:$0xf]
    %v262 = vld [vmem:[#allocation6 + $0x2c] sm:$0xf]
    %v263 = vld [vmem:[#allocation6 + $0x30] sm:$0xf]
    %v264 = vld [vmem:[#allocation6 + $0x34] sm:$0xf]
    %v265 = vld [vmem:[#allocation6 + $0x38] sm:$0xf]
    %v266 = vld [vmem:[#allocation6 + $0x3c] sm:$0xf]
    %v267 = vld [vmem:[#allocation6 + $0x40] sm:$0xf]
    %v268 = vld [vmem:[#allocation6 + $0x44] sm:$0xf]
    %v269 = vld [vmem:[#allocation6 + $0x48] sm:$0xf]
    %v270 = vld [vmem:[#allocation6 + $0x4c] sm:$0xf]
    %v271 = vld [vmem:[#allocation6 + $0x50] sm:$0xf]
    %v272 = vld [vmem:[#allocation6 + $0x54] sm:$0xf]
    %v273 = vld [vmem:[#allocation6 + $0x58] sm:$0xf]
    %v274 = vld [vmem:[#allocation6 + $0x5c] sm:$0xf]
    %v275 = vld [vmem:[#allocation6 + $0x60] sm:$0xf]
    %v276 = vld [vmem:[#allocation6 + $0x64] sm:$0xf]
    %v277 = vld [vmem:[#allocation6 + $0x68] sm:$0xf]
    %v278 = vld [vmem:[#allocation6 + $0x6c] sm:$0xf]
    %v279 = vld [vmem:[#allocation6 + $0x70] sm:$0xf]
    %v280 = vld [vmem:[#allocation6 + $0x74] sm:$0xf]
    %v281 = vld [vmem:[#allocation6 + $0x78] sm:$0xf]
    %v282 = vld [vmem:[#allocation6 + $0x7c] sm:$0xf]
    %v283 = vld [vmem:[#allocation6 + $0x80] sm:$0xf]
    %v284 = vld [vmem:[#allocation6 + $0x84] sm:$0xf]
    %v285 = vld [vmem:[#allocation6 + $0x88] sm:$0xf]
    %v286 = vld [vmem:[#allocation6 + $0x8c] sm:$0xf]
    %v287 = vld [vmem:[#allocation6 + $0x90] sm:$0xf]
    %v288 = vld [vmem:[#allocation6 + $0x94] sm:$0xf]
    %v289 = vld [vmem:[#allocation6 + $0x98] sm:$0xf]
    %v290 = vld [vmem:[#allocation6 + $0x9c] sm:$0xf]
    %v291 = vld [vmem:[#allocation6 + $0xa0] sm:$0xf]
    %v292 = vld [vmem:[#allocation6 + $0xa4] sm:$0xf]
    %v293 = vld [vmem:[#allocation6 + $0xa8] sm:$0xf]
    %v294 = vld [vmem:[#allocation6 + $0xac] sm:$0xf]
    %v295 = vld [vmem:[#allocation6 + $0xb0] sm:$0xf]
    %v296 = vld [vmem:[#allocation6 + $0xb4] sm:$0xf]
    %v297 = vld [vmem:[#allocation6 + $0xb8] sm:$0xf]
    %v298 = vld [vmem:[#allocation6 + $0xbc] sm:$0xf]
    %v299 = vld [vmem:[#allocation6 + $0xc0] sm:$0xf]
    %v300 = vld [vmem:[#allocation6 + $0xc4] sm:$0xf]
    %v301 = vld [vmem:[#allocation6 + $0xc8] sm:$0xf]
    %v302 = vld [vmem:[#allocation6 + $0xcc] sm:$0xf]
    %v303 = vld [vmem:[#allocation6 + $0xd0] sm:$0xf]
    %v304 = vld [vmem:[#allocation6 + $0xd4] sm:$0xf]
    %v305 = vld [vmem:[#allocation6 + $0xd8] sm:$0xf]
    %v306 = vld [vmem:[#allocation6 + $0xdc] sm:$0xf]
    %v307 = vld [vmem:[#allocation6 + $0xe0] sm:$0xf]
    %v308 = vld [vmem:[#allocation6 + $0xe4] sm:$0xf]
    %v309 = vld [vmem:[#allocation6 + $0xe8] sm:$0xf]
    %v310 = vld [vmem:[#allocation6 + $0xec] sm:$0xf]
    %v311 = vld [vmem:[#allocation6 + $0xf0] sm:$0xf]
    %v312 = vld [vmem:[#allocation6 + $0xf4] sm:$0xf]
    %v313 = vld [vmem:[#allocation6 + $0xf8] sm:$0xf]
    %v314 = vld [vmem:[#allocation6 + $0xfc] sm:$0xf]
    %v379 = vunpack.c.l.b16 %v251
    %v380 = vunpack.c.l.b16 %v252
    %v381 = vunpack.c.l.b16 %v253
    %v382 = vunpack.c.l.b16 %v254
    %v383 = vunpack.c.l.b16 %v255
    %v384 = vunpack.c.l.b16 %v256
    %v385 = vunpack.c.l.b16 %v257
    %v386 = vunpack.c.l.b16 %v258
    %v387 = vunpack.c.l.b16 %v259
    %v388 = vunpack.c.l.b16 %v260
    %v389 = vunpack.c.l.b16 %v261
    %v390 = vunpack.c.l.b16 %v262
    %v391 = vunpack.c.l.b16 %v263
    %v392 = vunpack.c.l.b16 %v264
    %v393 = vunpack.c.l.b16 %v265
    %v394 = vunpack.c.l.b16 %v266
    %v395 = vunpack.c.l.b16 %v267
    %v396 = vunpack.c.l.b16 %v268
    %v397 = vunpack.c.l.b16 %v269
    %v398 = vunpack.c.l.b16 %v270
    %v399 = vunpack.c.l.b16 %v271
    %v400 = vunpack.c.l.b16 %v272
    %v401 = vunpack.c.l.b16 %v273
    %v402 = vunpack.c.l.b16 %v274
    %v403 = vunpack.c.l.b16 %v275
    %v404 = vunpack.c.l.b16 %v276
    %v405 = vunpack.c.l.b16 %v277
    %v406 = vunpack.c.l.b16 %v278
    %v407 = vunpack.c.l.b16 %v279
    %v408 = vunpack.c.l.b16 %v280
    %v409 = vunpack.c.l.b16 %v281
    %v410 = vunpack.c.l.b16 %v282
    %v411 = vunpack.c.l.b16 %v283
    %v412 = vunpack.c.l.b16 %v284
    %v413 = vunpack.c.l.b16 %v285
    %v414 = vunpack.c.l.b16 %v286
    %v415 = vunpack.c.l.b16 %v287
    %v416 = vunpack.c.l.b16 %v288
    %v417 = vunpack.c.l.b16 %v289
    %v418 = vunpack.c.l.b16 %v290
    %v419 = vunpack.c.l.b16 %v291
    %v420 = vunpack.c.l.b16 %v292
    %v421 = vunpack.c.l.b16 %v293
    %v422 = vunpack.c.l.b16 %v294
    %v423 = vunpack.c.l.b16 %v295
    %v424 = vunpack.c.l.b16 %v296
    %v425 = vunpack.c.l.b16 %v297
    %v426 = vunpack.c.l.b16 %v298
    %v427 = vunpack.c.l.b16 %v299
    %v428 = vunpack.c.l.b16 %v300
    %v429 = vunpack.c.l.b16 %v301
    %v430 = vunpack.c.l.b16 %v302
    %v431 = vunpack.c.l.b16 %v303
    %v432 = vunpack.c.l.b16 %v304
    %v433 = vunpack.c.l.b16 %v305
    %v434 = vunpack.c.l.b16 %v306
    %v435 = vunpack.c.l.b16 %v307
    %v436 = vunpack.c.l.b16 %v308
    %v437 = vunpack.c.l.b16 %v309
    %v438 = vunpack.c.l.b16 %v310
    %v439 = vunpack.c.l.b16 %v311
    %v440 = vunpack.c.l.b16 %v312
    %v441 = vunpack.c.l.b16 %v313
    %v442 = vunpack.c.l.b16 %v314
    %v443 = vpack.c.b16 %v380, %v379
    %v444 = vpack.c.b16 %v382, %v381
    %v445 = vpack.c.b16 %v384, %v383
    %v446 = vpack.c.b16 %v386, %v385
    %v447 = vpack.c.b16 %v388, %v387
    %v448 = vpack.c.b16 %v390, %v389
    %v449 = vpack.c.b16 %v392, %v391
    %v450 = vpack.c.b16 %v394, %v393
    %v451 = vpack.c.b16 %v396, %v395
    %v452 = vpack.c.b16 %v398, %v397
    %v453 = vpack.c.b16 %v400, %v399
    %v454 = vpack.c.b16 %v402, %v401
    %v455 = vpack.c.b16 %v404, %v403
    %v456 = vpack.c.b16 %v406, %v405
    %v457 = vpack.c.b16 %v408, %v407
    %v458 = vpack.c.b16 %v410, %v409
    %v459 = vpack.c.b16 %v412, %v411
    %v460 = vpack.c.b16 %v414, %v413
    %v461 = vpack.c.b16 %v416, %v415
    %v462 = vpack.c.b16 %v418, %v417
    %v463 = vpack.c.b16 %v420, %v419
    %v464 = vpack.c.b16 %v422, %v421
    %v465 = vpack.c.b16 %v424, %v423
    %v466 = vpack.c.b16 %v426, %v425
    %v467 = vpack.c.b16 %v428, %v427
    %v468 = vpack.c.b16 %v430, %v429
    %v469 = vpack.c.b16 %v432, %v431
    %v470 = vpack.c.b16 %v434, %v433
    %v471 = vpack.c.b16 %v436, %v435
    %v472 = vpack.c.b16 %v438, %v437
    %v473 = vpack.c.b16 %v440, %v439
    %v474 = vpack.c.b16 %v442, %v441
    %507 = vmatprep.subr.bf16.mxu0 0
    %508 = vmatpush1.bf16.msra.mxu0 %v443
    %509 = vmatprep.subr.bf16.mxu0 0
    %510 = vmatpush1.bf16.msra.mxu0 %v444
    %511 = vmatprep.subr.bf16.mxu0 0
    %512 = vmatpush1.bf16.msra.mxu0 %v445
    %513 = vmatprep.subr.bf16.mxu0 0
    %514 = vmatpush1.bf16.msra.mxu0 %v446
    %515 = vmatprep.subr.bf16.mxu0 0
    %516 = vmatpush1.bf16.msra.mxu0 %v447
    %517 = vmatprep.subr.bf16.mxu0 0
    %518 = vmatpush1.bf16.msra.mxu0 %v448
    %519 = vmatprep.subr.bf16.mxu0 0
    %520 = vmatpush1.bf16.msra.mxu0 %v449
    %521 = vmatprep.subr.bf16.mxu0 0
    %522 = vmatpush1.bf16.msra.mxu0 %v450
    %523 = vmatprep.subr.bf16.mxu0 0
    %524 = vmatpush1.bf16.msra.mxu0 %v451
    %525 = vmatprep.subr.bf16.mxu0 0
    %526 = vmatpush1.bf16.msra.mxu0 %v452
    %527 = vmatprep.subr.bf16.mxu0 0
    %528 = vmatpush1.bf16.msra.mxu0 %v453
    %529 = vmatprep.subr.bf16.mxu0 0
    %530 = vmatpush1.bf16.msra.mxu0 %v454
    %531 = vmatprep.subr.bf16.mxu0 0
    %532 = vmatpush1.bf16.msra.mxu0 %v455
    %533 = vmatprep.subr.bf16.mxu0 0
    %534 = vmatpush1.bf16.msra.mxu0 %v456
    %535 = vmatprep.subr.bf16.mxu0 0
    %536 = vmatpush1.bf16.msra.mxu0 %v457
    %537 = vmatprep.subr.bf16.mxu0 0
    %538 = vmatpush1.bf16.msra.mxu0 %v458
    %539 = vmatprep.mubr.bf16.mxu0 %v248
    %540 = vmatmul.mubr.bf16.gmra.mrb[0].mxu0 %v247
    %v541 = vpop.f32.mrb[0].mxu0
    %v542 = vadd.f32 0.0, %v541
    %v543 = vpop.f32.mrb[0].mxu0
    %v544 = vpop.f32.mrb[0].mxu0
    %v545 = vpop.f32.mrb[0].mxu0
    %546 = vdwg.mxu0
    %547 = vmatprep.subr.bf16.mxu0 0
    %548 = vmatpush1.bf16.msra.mxu0 %v459
    %549 = vmatprep.subr.bf16.mxu0 0
    %550 = vmatpush1.bf16.msra.mxu0 %v460
    %551 = vmatprep.subr.bf16.mxu0 0
    %552 = vmatpush1.bf16.msra.mxu0 %v461
    %553 = vmatprep.subr.bf16.mxu0 0
    %554 = vmatpush1.bf16.msra.mxu0 %v462
    %555 = vmatprep.subr.bf16.mxu0 0
    %556 = vmatpush1.bf16.msra.mxu0 %v463
    %557 = vmatprep.subr.bf16.mxu0 0
    %558 = vmatpush1.bf16.msra.mxu0 %v464
    %559 = vmatprep.subr.bf16.mxu0 0
    %560 = vmatpush1.bf16.msra.mxu0 %v465
    %561 = vmatprep.subr.bf16.mxu0 0
    %562 = vmatpush1.bf16.msra.mxu0 %v466
    %563 = vmatprep.subr.bf16.mxu0 0
    %564 = vmatpush1.bf16.msra.mxu0 %v467
    %565 = vmatprep.subr.bf16.mxu0 0
    %566 = vmatpush1.bf16.msra.mxu0 %v468
    %567 = vmatprep.subr.bf16.mxu0 0
    %568 = vmatpush1.bf16.msra.mxu0 %v469
    %569 = vmatprep.subr.bf16.mxu0 0
    %570 = vmatpush1.bf16.msra.mxu0 %v470
    %571 = vmatprep.subr.bf16.mxu0 0
    %572 = vmatpush1.bf16.msra.mxu0 %v471
    %573 = vmatprep.subr.bf16.mxu0 0
    %574 = vmatpush1.bf16.msra.mxu0 %v472
    %575 = vmatprep.subr.bf16.mxu0 0
    %576 = vmatpush1.bf16.msra.mxu0 %v473
    %577 = vmatprep.subr.bf16.mxu0 0
    %578 = vmatpush1.bf16.msra.mxu0 %v474
    %579 = vmatprep.mubr.bf16.mxu0 %v250
    %580 = vmatmul.mubr.bf16.gmra.mrb[0].mxu0 %v249
    %v581 = vpop.f32.mrb[0].mxu0
    %v582 = vadd.f32 %v542, %v581
    %v583 = vpop.f32.mrb[0].mxu0
    %v584 = vpop.f32.mrb[0].mxu0
    %v585 = vpop.f32.mrb[0].mxu0
    %586 = vdwg.mxu0
    %v587 = vld [vmem:[%s4] sm:$0x1]
    %v589 = vlaneseq
    %v590 = vshrl.u32 %v589, 7
    %v591 = vsub.s32 0, %v590
    %v592 = vrot.slane %v587, %v591
    %v594 = vadd.f32 %v582, %v592
    %vm595 = vcmask 23552
    %596 = vst.msk [vmem:[%s5] sm:$0xff] %vm595, %v594
    // Predicated region
    $region34: #{tpu_custom_call.1} parent=1 // pred_check
      _
    $region35: #{tpu_custom_call.1} parent=1 // pred_check_branch
      %598 = sbr.rel (0) target = $region37
    $region36: #{tpu_custom_call.1} parent=1 // pred_region
      _
    $region37: #{tpu_custom_call.1} parent=1 // pred_fallthru
      _
    // Predicated region
    $region38: #{tpu_custom_call.1} parent=1 // pred_check
      _
    $region39: #{tpu_custom_call.1} parent=1 // pred_check_branch
      %600 = sbr.rel (0) target = $region41
    $region40: #{tpu_custom_call.1} parent=1 // pred_region
      _
    $region41: #{tpu_custom_call.1} parent=1 // pred_fallthru
      _
    %601 = vsyncpa [#allocation3], 1
    %602 = vsyncpa [#allocation5], 1

</llo_original>
